<compile_context>
chip_gen: v7x
topology: tpu7x:2x2x1
jax: 0.10.0
libtpu: 0.0.40
codegen_flags: <defaults>
</compile_context>

<pallas_src>
import functools

import jax
import jax.numpy as jnp
from jax.experimental import pallas as pl
from jax.experimental.pallas import tpu as pltpu


# ----------------------------------------------------------------------------
# Small helpers
# ----------------------------------------------------------------------------
def _round_up(x, m):
    return ((x + m - 1) // m) * m


def _pad2d(a, rows, cols):
    r, c = a.shape
    if r == rows and c == cols:
        return a
    return jnp.pad(a, ((0, rows - r), (0, cols - c)))


# Per-TensorCore budget for resident weights (v7x has 64 MiB VMEM per TC and
# each TC holds its own weight copy when the row axis is 'parallel').
_WEIGHT_RESIDENT_BUDGET = 44 << 20


# ----------------------------------------------------------------------------
# Kernel 1: fused MLP stack  (Linear -> activation [-> Dropout(eval)=Id]) * L
# All weights/biases stay resident in VMEM across grid steps; intermediates
# never touch HBM.
# ----------------------------------------------------------------------------
def _fused_mlp_kernel(*refs, activation, num_layers):
    x_ref = refs[0]
    o_ref = refs[-1]
    h = x_ref[...].astype(jnp.float32)
    for l in range(num_layers):
        w = refs[1 + 2 * l][...]          # (Din_p, Dout_p), weight_dtype
        b = refs[2 + 2 * l][...]          # (1, Dout_p) -> broadcasts over rows
        h = jnp.dot(h.astype(w.dtype), w, preferred_element_type=jnp.float32)
        h = h + b.astype(jnp.float32)
        if activation == "relu":
            h = jnp.maximum(h, 0.0)
        else:  # tanh
            h = jnp.tanh(h)
        # nn.Dropout(p): eval-mode identity.
    o_ref[...] = h.astype(o_ref.dtype)


def fused_mlp(x2d, params, activation, *, tile_rows=1024,
              weight_dtype=jnp.bfloat16, out_dtype=None):
    """x2d: (N, Din) f32, params: [(W, b), ...] unpadded -> (N, D_last).

    Empty params -> Identity (matches nn.Identity for empty layer_dims).
    Feature dims are padded to multiples of 128 (lane-dense); rows are tiled
    with a 'parallel' grid axis (ragged last block allowed).
    """
    if activation not in ("relu", "tanh"):
        raise ValueError("Unsupported activation type!")
    if not params:
        return x2d
    out_dtype = x2d.dtype if out_dtype is None else out_dtype

    n, din = x2d.shape
    dout = params[-1][0].shape[1]

    # ---- padded feature dims + resident weight footprint --------------------
    w_itemsize = jnp.dtype(weight_dtype).itemsize
    dims_p = [_round_up(din, 128)] + [_round_up(w.shape[1], 128) for w, _ in params]
    wbytes = sum((dims_p[l] * dims_p[l + 1] + dims_p[l + 1]) * w_itemsize
                 for l in range(len(params)))

    # v7x gate: if the whole stack can't sit resident in VMEM, chain layers.
    if len(params) > 1 and wbytes > _WEIGHT_RESIDENT_BUDGET:
        # TODO(synk): K/N-tiled matmul grid for single layers exceeding VMEM.
        h = x2d
        for wb in params:
            h = fused_mlp(h, [wb], activation, tile_rows=tile_rows,
                          weight_dtype=weight_dtype, out_dtype=out_dtype)
        return h

    din_p, dout_p = dims_p[0], dims_p[-1]

    # ---- pre-cast (bf16 by default) + lane-dense zero padding ---------------
    padded = []
    for l, (w, b) in enumerate(params):
        w_p = _pad2d(w.astype(weight_dtype), dims_p[l], dims_p[l + 1])
        b_p = _pad2d(b.reshape(1, -1).astype(weight_dtype), 1, dims_p[l + 1])
        padded.append((w_p, b_p))

    # ---- row tiling: pad N only to a multiple of 8, ragged grid, >=2 steps --
    n_p = _round_up(n, 8)
    tile_n = min(tile_rows, _round_up(pl.cdiv(n_p, 2), 8))
    tile_n = max(8, min(tile_n, n_p))
    num_blocks = pl.cdiv(n_p, tile_n)
    x_p = _pad2d(x2d, n_p, din_p)

    # ---- explicit VMEM budget (conservative: weights double-buffered) -------
    out_itemsize = jnp.dtype(out_dtype).itemsize
    vmem_bytes = (2 * wbytes
                  + 2 * tile_n * din_p * 4
                  + 2 * tile_n * dout_p * out_itemsize
                  + 2 * tile_n * max(dims_p) * 4
                  + (4 << 20))
    vmem_limit = min(vmem_bytes, 64 << 20)

    kernel = functools.partial(_fused_mlp_kernel, activation=activation,
                               num_layers=len(params))

    def _call(single_buffer):
        def const_spec(shape):
            if single_buffer:
                return pl.BlockSpec(shape, lambda i: (0, 0),
                                    pipeline_mode=pl.Buffered(1))
            return pl.BlockSpec(shape, lambda i: (0, 0))

        in_specs = [pl.BlockSpec((tile_n, din_p), lambda i: (i, 0))]
        flat_inputs = [x_p]
        for w_p, b_p in padded:
            in_specs.append(const_spec(w_p.shape))   # weight: resident
            in_specs.append(const_spec(b_p.shape))   # bias:   resident
            flat_inputs.extend([w_p, b_p])

        return pl.pallas_call(
            kernel,
            out_shape=jax.ShapeDtypeStruct((n_p, dout_p), out_dtype),
            grid=(num_blocks,),
            in_specs=in_specs,
            out_specs=pl.BlockSpec((tile_n, dout_p), lambda i: (i, 0)),
            compiler_params=pltpu.CompilerParams(
                dimension_semantics=("parallel",),
                vmem_limit_bytes=vmem_limit,
            ),
        )(*flat_inputs)

    if hasattr(pl, "Buffered"):
        try:
            out = _call(single_buffer=True)
        except Exception:
            out = _call(single_buffer=False)
    else:
        out = _call(single_buffer=False)
    return out[:n, :dout]


# ----------------------------------------------------------------------------
# Kernel 2: fused elementwise helpers (impute NaNs + mix), lane-dense, batched
# ----------------------------------------------------------------------------
def _impute_zero_kernel(x_ref, o_ref):
    x = x_ref[...]
    o_ref[...] = jnp.where(jnp.isnan(x), jnp.zeros_like(x), x)


def _impute_kernel(x_ref, y_ref, o_ref):
    x = x_ref[...]
    o_ref[...] = jnp.where(jnp.isnan(x), y_ref[...], x)


def _mix_kernel(x_ref, y_ref, sel_ref, o_ref):
    s = sel_ref[...]
    o_ref[...] = s * y_ref[...] + (1.0 - s) * x_ref[...]


def _impute_mix_kernel(x_ref, y_ref, sel_ref, o_ref):
    # Fused: impute NaNs with y, then mix with mode selector (single pass).
    x = x_ref[...]
    y = y_ref[...]
    s = sel_ref[...]
    xi = jnp.where(jnp.isnan(x), y, x)
    o_ref[...] = s * y + (1.0 - s) * xi


_EW_LANES = 1024       # lane-dense slab width (multiple of 128)
_EW_TILE_ROWS = 512    # (512, 1024) f32 block ~= 2 MiB per operand


def _elementwise(kernel, out_dtype, *arrays):
    """Run an elementwise kernel over same-shaped arrays.

    All inputs are flattened into a lane-dense (rows, 1024) slab (zero tail
    pad), so stores are full-width and the kernel runs at HBM bandwidth.
    """
    shape = arrays[0].shape
    total = 1
    for d in shape:
        total *= d

    last = _EW_LANES if total >= _EW_LANES else _round_up(total, 128)
    rows = pl.cdiv(total, last)
    padded_total = rows * last

    flats = []
    for a in arrays:
        f = a.reshape(-1)
        if padded_total != total:
            f = jnp.pad(f, (0, padded_total - total))
        flats.append(f.reshape(rows, last))

    tile_r = rows if rows <= _EW_TILE_ROWS else _EW_TILE_ROWS
    grid = (pl.cdiv(rows, tile_r),)

    out = pl.pallas_call(
        kernel,
        out_shape=jax.ShapeDtypeStruct((rows, last), out_dtype),
        grid=grid,
        in_specs=[pl.BlockSpec((tile_r, last), lambda i: (i, 0))] * len(flats),
        out_specs=pl.BlockSpec((tile_r, last), lambda i: (i, 0)),
        compiler_params=pltpu.CompilerParams(
            dimension_semantics=("parallel",),
        ),
    )(*flats)
    return out.reshape(-1)[:total].reshape(shape)


def impute_inputs_nans_with_output(input_t, y_t, t):
    if t == 0:
        return _elementwise(_impute_zero_kernel, input_t.dtype, input_t)
    return _elementwise(_impute_kernel, input_t.dtype, input_t, y_t)


def mix_inputs_with_outputs(input_t, y_t, mode_selector_t, t):
    if t == 0:
        return input_t
    return _elementwise(_mix_kernel, input_t.dtype, input_t, y_t, mode_selector_t)


def impute_and_mix(input_t, y_t, mode_selector_t, t):
    """Fused impute->mix in a single launch (per timestep)."""
    if t == 0:
        return _elementwise(_impute_zero_kernel, input_t.dtype, input_t)
    return _elementwise(_impute_mix_kernel, input_t.dtype,
                        input_t, y_t, mode_selector_t)


def impute_and_mix_sequence(x_seq, y_seq, mode_selector):
    """ONE fused launch over the whole (T, B, D) sequence.

    t == 0 semantics (zero-impute, no mixing) are folded in by zeroing y[0]
    and mode_selector[0] in the wrapper -- no separate launch, no concatenate.
    """
    y0 = y_seq.at[0].set(0.0)
    sel0 = mode_selector.at[0].set(0.0)
    return _elementwise(_impute_mix_kernel, x_seq.dtype, x_seq, y0, sel0)


# ----------------------------------------------------------------------------
# Plain-JAX glue: prepare_mode_selector (pure broadcasting, no compute)
# ----------------------------------------------------------------------------
def prepare_mode_selector(mode_selector, seq_len, batch_size, x_dim):
    if mode_selector is None:
        mode_selector = jnp.zeros((seq_len,), dtype=jnp.float32)
    else:
        mode_selector = jnp.asarray(mode_selector, dtype=jnp.float32)
    if mode_selector.ndim == 0:
        return jnp.broadcast_to(mode_selector.reshape(1, 1, 1),
                                (seq_len, batch_size, x_dim))
    if mode_selector.ndim == 1:
        return jnp.broadcast_to(mode_selector.reshape(seq_len, 1, 1),
                                (seq_len, batch_size, x_dim))
    if mode_selector.ndim == 2:
        assert mode_selector.shape == (seq_len, batch_size)
        return jnp.broadcast_to(mode_selector.reshape(seq_len, batch_size, 1),
                                (seq_len, batch_size, x_dim))
    if mode_selector.ndim == 3:
        assert mode_selector.shape == (seq_len, batch_size, x_dim)
        return mode_selector
    raise ValueError(f"Unsupported mode_selector shape: {mode_selector.shape}")


# ----------------------------------------------------------------------------
# BaseModel-equivalent: deterministic parameter init (nn.Linear default init)
# ----------------------------------------------------------------------------
def build_sequential_params(key, layer_dims, input_dim):
    """Mirrors _build_sequential_layers: returns ([(W, b), ...], output_dim)."""
    params = []
    for output_dim in layer_dims:
        key, kw, kb = jax.random.split(key, 3)
        bound = 1.0 / jnp.sqrt(jnp.asarray(input_dim, jnp.float32))
        w = jax.random.uniform(kw, (input_dim, output_dim), jnp.float32,
                               minval=-bound, maxval=bound)
        b = jax.random.uniform(kb, (output_dim,), jnp.float32,
                               minval=-bound, maxval=bound)
        params.append((w, b))
        input_dim = output_dim
    return params, input_dim


# ----------------------------------------------------------------------------
# Pure-JAX references (correctness checks)
# ----------------------------------------------------------------------------
def _ref_mlp(x, params, activation):
    for w, b in params:
        x = x @ w + b
        x = jnp.maximum(x, 0.0) if activation == "relu" else jnp.tanh(x)
    return x


def _ref_impute_mix(x, y, sel, t):
    xi = jnp.where(jnp.isnan(x), jnp.zeros_like(x) if t == 0 else y, x)
    if t == 0:
        return xi
    return sel * y + (1.0 - sel) * xi


# ----------------------------------------------------------------------------
# Demo
# ----------------------------------------------------------------------------
if __name__ == "__main__":
    key = jax.random.PRNGKey(0)
    seq_len, batch, x_dim = 8, 2, 16
    layer_dims = (32, 32)
    activation = "relu"
    dropout_p = 0.1  # eval-mode dropout == identity

    k_x, k_y, k_params = jax.random.split(key, 3)
    x = jax.random.normal(k_x, (seq_len, batch, x_dim), jnp.float32)
    y_prev = jax.random.normal(k_y, (seq_len, batch, x_dim), jnp.float32)

    # inject a few NaNs to exercise the impute path
    x = x.at[1, 0, 3].set(jnp.nan).at[2, 1, 7].set(jnp.nan).at[0, 1, 2].set(jnp.nan)

    # mode selector (scalar 0.5 -> broadcast to (T, B, D))
    mode_selector = prepare_mode_selector(0.5, seq_len, batch, x_dim)

    # ---- fused impute + mix: ONE launch over the whole sequence ------------
    mixed = impute_and_mix_sequence(x, y_prev, mode_selector)

    # per-timestep helper path (same semantics as the torch helpers, t = 1)
    t = 1
    imputed_t = impute_inputs_nans_with_output(x[t], y_prev[t], t)
    mixed_t = mix_inputs_with_outputs(imputed_t, y_prev[t], mode_selector[t], t)

    # ---- fused MLP stack over the whole sequence (features last) -----------
    params, out_dim = build_sequential_params(k_params, layer_dims, x_dim)
    mixed2d = mixed.reshape(seq_len * batch, x_dim)
    h_bf16 = fused_mlp(mixed2d, params, activation)                      # bf16 weights (default)
    h_f32 = fused_mlp(mixed2d, params, activation,
                      weight_dtype=jnp.float32)                          # f32 validation path
    h = h_bf16.reshape(seq_len, batch, out_dim)
    h_f32 = h_f32.reshape(seq_len, batch, out_dim)

    jax.block_until_ready((mixed, mixed_t, h, h_f32))

    # ---- correctness vs pure-JAX references --------------------------------
    ref_mixed0 = _ref_impute_mix(x[0], y_prev[0], mode_selector[0], t=0)
    ref_mixed_rest = _ref_impute_mix(x[1:], y_prev[1:], mode_selector[1:], t=1)
    ref_mixed = jnp.concatenate([ref_mixed0[None], ref_mixed_rest], axis=0)
    ref_h = _ref_mlp(ref_mixed.reshape(seq_len * batch, x_dim),
                     params, activation).reshape(seq_len, batch, out_dim)
    ref_mixed_t = _ref_impute_mix(x[t], y_prev[t], mode_selector[t], t=1)

    assert h.shape == (seq_len, batch, layer_dims[-1])
    assert mixed_t.shape == (batch, x_dim)
    assert not bool(jnp.isnan(mixed).any())
    assert not bool(jnp.isnan(h).any())
    assert bool(jnp.allclose(mixed, ref_mixed, atol=1e-6, rtol=1e-6))
    assert bool(jnp.allclose(mixed_t, ref_mixed_t, atol=1e-6, rtol=1e-6))
    assert bool(jnp.allclose(h_f32, ref_h, atol=1e-5, rtol=1e-5))   # f32 path: tight
    assert bool(jnp.allclose(h, ref_h, atol=5e-2, rtol=5e-2))       # bf16 path: loose
    print("KERNEL_OK")
</pallas_src>

<mosaic_0001>
module attributes {stable_mosaic.version = 11 : i64} {
  func.func @_impute_mix_kernel(%arg0: i32, %arg1: memref<1x256xf32, #tpu.memory_space<vmem>>, %arg2: memref<1x256xf32, #tpu.memory_space<vmem>>, %arg3: memref<1x256xf32, #tpu.memory_space<vmem>>, %arg4: memref<1x256xf32, #tpu.memory_space<vmem>>) attributes {dimension_semantics = [#tpu.dimension_semantics<parallel>], iteration_bounds = array<i64: 1>, scalar_prefetch = 0 : i64, scratch_operands = 0 : i64, tpu.core_type = #tpu.core_type<tc>, window_params = [{transform_indices = @transform_0, window_bounds = array<i64: 1, 256>}, {transform_indices = @transform_1, window_bounds = array<i64: 1, 256>}, {transform_indices = @transform_2, window_bounds = array<i64: 1, 256>}, {transform_indices = @transform_3, window_bounds = array<i64: 1, 256>}]} {
    %c0 = arith.constant 0 : index
    %c0_0 = arith.constant 0 : index
    %0 = vector.load %arg1[%c0, %c0_0] : memref<1x256xf32, #tpu.memory_space<vmem>>, vector<1x256xf32>
    %c0_1 = arith.constant 0 : index
    %c0_2 = arith.constant 0 : index
    %1 = vector.load %arg2[%c0_1, %c0_2] : memref<1x256xf32, #tpu.memory_space<vmem>>, vector<1x256xf32>
    %c0_3 = arith.constant 0 : index
    %c0_4 = arith.constant 0 : index
    %2 = vector.load %arg3[%c0_3, %c0_4] : memref<1x256xf32, #tpu.memory_space<vmem>>, vector<1x256xf32>
    %3 = arith.cmpf one, %0, %0 : vector<1x256xf32>
    %4 = arith.select %3, %1, %0 : vector<1x256xi1>, vector<1x256xf32>
    %5 = arith.mulf %2, %1 : vector<1x256xf32>
    %cst = arith.constant 1.000000e+00 : f32
    %6 = vector.broadcast %cst : f32 to vector<1x256xf32>
    %7 = arith.subf %6, %2 : vector<1x256xf32>
    %8 = arith.mulf %7, %4 : vector<1x256xf32>
    %9 = arith.addf %5, %8 : vector<1x256xf32>
    %c0_5 = arith.constant 0 : index
    %c0_6 = arith.constant 0 : index
    %10 = vector.load %arg4[%c0_5, %c0_6] : memref<1x256xf32, #tpu.memory_space<vmem>>, vector<1x256xf32>
    tpu.vector_store %arg4[%c0_5, %c0_6], %9 {strides = array<i32>} : memref<1x256xf32, #tpu.memory_space<vmem>>, vector<1x256xf32>,
    return
  }
  func.func @transform_0(%arg0: i32) -> (i32, i32) {
    %c0_i32 = arith.constant 0 : i32
    %c0_i32_0 = arith.constant 0 : i32
    return %arg0, %c0_i32 : i32, i32
  }
  func.func @transform_1(%arg0: i32) -> (i32, i32) {
    %c0_i32 = arith.constant 0 : i32
    %c0_i32_0 = arith.constant 0 : i32
    return %arg0, %c0_i32 : i32, i32
  }
  func.func @transform_2(%arg0: i32) -> (i32, i32) {
    %c0_i32 = arith.constant 0 : i32
    %c0_i32_0 = arith.constant 0 : i32
    return %arg0, %c0_i32 : i32, i32
  }
  func.func @transform_3(%arg0: i32) -> (i32, i32) {
    %c0_i32 = arith.constant 0 : i32
    %c0_i32_0 = arith.constant 0 : i32
    return %arg0, %c0_i32 : i32, i32
  }
}

</mosaic_0001>

<llo_original>
// kernel: tpu_custom_call.1
$region0: #{tpu_custom_call.1}
  #allocation0 [shape = 'u32[]', space=smem, size = 0x4, offset = 0x4, fixed_abs, tag = 'smem constant byte address 0x4 - core index']
  #allocation1 [shape = 'u32[144,128]{1,0:T(1,128)}', space=vmem, size = 0x12000, scoped, tag = 'internal scratch']
  %s0 = inlined_call_operand.hbm [shape: f32[1,256], index: 0, kind: input, shape index: {}]
  %s1 = inlined_call_operand.vmem [shape: f32[1,256], index: 1, kind: input, shape index: {}]
  %s2 = inlined_call_operand.vmem [shape: f32[1,256], index: 2, kind: input, shape index: {}]
  %s3 = inlined_call_operand.hbm [shape: f32[1,256], index: 3, kind: output, shape index: {}]
  %s4 = sld [smem:[#allocation0]]
  $region26: #{tpu_custom_call.1} parent=0
    _
  %s6 = ssub.s32 1, %s4
  %s7 = scalar_select 0, %s6, %s4
  $region1: #{tpu_custom_call.1} parent=0
    #allocation2 [shape = 'u8[1024]{0}', space=vmem, size = 0x400, scoped, tag = 'input window, operand 0, single buffered']
    #allocation3 [shape = 's32[1]{0}', space=sflag, size = 0x4, scoped, tag = 'scoped memory for tpu_custom_call.1']
    #allocation4 [shape = 's32[1]{0}', space=sflag, size = 0x4, scoped, tag = 'scoped memory for tpu_custom_call.1']
    #allocation5 [shape = 'u8[1024]{0}', space=vmem, size = 0x400, scoped, tag = 'output window, operand 0, single buffered']
    %8 = vsyncpa [#allocation3], 0
    %9 = vsyncpa [#allocation4], 0
    // Predicated region
    $region2: #{tpu_custom_call.1} parent=1 // pred_check
      _
    $region3: #{tpu_custom_call.1} parent=1 // pred_check_branch
      %11 = sbr.rel (0) target = $region5
    $region4: #{tpu_custom_call.1} parent=1 // pred_region
      %s13 = ssub.s32 32, 32
      %14 = vsyncadd [#allocation3], %s13
      %s16 = sshll.u32 [#allocation2], 4
      %s17 = int_to_ptr.vmem [resolvable:$true] %s16
      %19 = dma.hbm_to_vmem [thread:$0]  %s0, 32, %s17, [#allocation3]
    $region5: #{tpu_custom_call.1} parent=1 // pred_fallthru
      _
    // Predicated region
    $region6: #{tpu_custom_call.1} parent=1 // pred_check
      _
    $region7: #{tpu_custom_call.1} parent=1 // pred_check_branch
      %21 = sbr.rel (0) target = $region9
    $region8: #{tpu_custom_call.1} parent=1 // pred_region
      _
    $region9: #{tpu_custom_call.1} parent=1 // pred_fallthru
      _
    // Predicated region
    $region10: #{tpu_custom_call.1} parent=1 // pred_check
      _
    $region11: #{tpu_custom_call.1} parent=1 // pred_check_branch
      %23 = sbr.rel (0) target = $region13
    $region12: #{tpu_custom_call.1} parent=1 // pred_region
      _
    $region13: #{tpu_custom_call.1} parent=1 // pred_fallthru
      _
    // Predicated region
    $region14: #{tpu_custom_call.1} parent=1 // pred_check
      _
    $region15: #{tpu_custom_call.1} parent=1 // pred_check_branch
      %25 = sbr.rel (0) target = $region17
    $region16: #{tpu_custom_call.1} parent=1 // pred_region
      %26 = dma.done [#allocation3], 32
    $region17: #{tpu_custom_call.1} parent=1 // pred_fallthru
      _
    %v27 = vld [vmem:[#allocation2] sm:$0x3]
    %v28 = vld [vmem:[%s1] sm:$0x3]
    %v29 = vld [vmem:[%s2] sm:$0x3]
    %vm30 = vcmp.ne.f32.partialorder %v27, %v27
    %v31 = vsel %vm30, %v28, %v27
    %v32 = vmul.f32 %v29, %v28
    %v33 = vsub.f32 1.0, %v29
    %v34 = vmul.f32 %v33, %v31
    %v35 = vadd.f32 %v32, %v34
    %v36 = vlaneseq
    %vm37 = vcmp.ge.s32.totalorder %v36, 0
    %vm38 = vcmp.lt.s32.totalorder %v36, 256
    %vm39 = vmand %vm37, %vm38
    %40 = vst.msk [vmem:[#allocation5] sm:$0x3] %vm39, %v35
    // Predicated region
    $region18: #{tpu_custom_call.1} parent=1 // pred_check
      _
    $region19: #{tpu_custom_call.1} parent=1 // pred_check_branch
      %42 = sbr.rel (0) target = $region21
    $region20: #{tpu_custom_call.1} parent=1 // pred_region
      %s44 = ssub.s32 32, 32
      %45 = vsyncadd [#allocation4], %s44
      %s47 = sshll.u32 [#allocation5], 4
      %s48 = int_to_ptr.vmem [resolvable:$true] %s47
      %50 = dma.vmem_to_hbm [thread:$0]  %s48, 32, %s3, [#allocation4]
    $region21: #{tpu_custom_call.1} parent=1 // pred_fallthru
      _
    // Predicated region
    $region22: #{tpu_custom_call.1} parent=1 // pred_check
      _
    $region23: #{tpu_custom_call.1} parent=1 // pred_check_branch
      %52 = sbr.rel (0) target = $region25
    $region24: #{tpu_custom_call.1} parent=1 // pred_region
      %53 = dma.done [#allocation4], 32
    $region25: #{tpu_custom_call.1} parent=1 // pred_fallthru
      _
    %54 = vsyncpa [#allocation3], 1
    %55 = vsyncpa [#allocation4], 1

</llo_original>
